<compile_context>
chip_gen: v6e
topology: v6e:2x2x1
jax: 0.10.0
libtpu: 0.0.40
codegen_flags: <defaults>
</compile_context>

<pallas_src>
import functools

import jax
import jax.numpy as jnp
from jax.experimental import pallas as pl
from jax.experimental.pallas import tpu as pltpu


def _round_up(x, m):
    return (x + m - 1) // m * m


def _cdiv(a, b):
    return -(-a // b)


# Rows above which it is worth splitting a single tile in two so both v7x
# TensorCores get a grid step.
_MEGACORE_MIN_ROWS = 512


def _ae_mlp_kernel(x_ref, w1_ref, b1_ref, w2_ref, b2_ref, out_ref):
    # Fused:  h = sigmoid(x @ W1 + b1) ; y = h @ W2 + b2
    # Cast activations to the weight dtype in VMEM (no HBM-side copy/cast).
    x = x_ref[...].astype(w1_ref.dtype)                               # (TM, D)
    h = jnp.dot(x, w1_ref[...], preferred_element_type=jnp.float32)   # (TM, Hp) f32
    h = jax.nn.sigmoid(h + b1_ref[...])                               # f32 bias+sigmoid (EUP)
    y = jnp.dot(h.astype(w2_ref.dtype), w2_ref[...],
                preferred_element_type=jnp.float32)                   # (TM, D) f32
    out_ref[...] = (y + b2_ref[...]).astype(out_ref.dtype)


def prepare_autoencoder_params(w1, b1, w2, b2, *,
                               compute_dtype=jnp.bfloat16,
                               lane_multiple=128):
    """Once-per-model weight repacking (hoisted out of the forward path).

    w1: [D, H], w2: [H, D] (pre-transposed relative to torch.nn.Linear, so
    y = x @ W + b matches torch's x @ W_t.T + b).  Only the hidden dim H is
    lane-padded (and only when H > lane_multiple); D is never padded so the
    activations need no wrapper-side copy.  Use lane_multiple=256 on v7x when
    H is large.
    """
    D, H = w1.shape
    cd = jnp.dtype(compute_dtype)
    Hp = _round_up(H, lane_multiple) if H > lane_multiple else H
    if Hp == H:
        w1_p = w1.astype(cd)
        b1_p = b1.reshape(1, -1).astype(jnp.float32)
        w2_p = w2.astype(cd)
    else:
        w1_p = jnp.zeros((D, Hp), cd).at[:, :H].set(w1.astype(cd))
        b1_p = jnp.zeros((1, Hp), jnp.float32).at[:, :H].set(
            b1.reshape(1, -1).astype(jnp.float32))
        w2_p = jnp.zeros((Hp, D), cd).at[:H, :].set(w2.astype(cd))
    b2_p = b2.reshape(1, -1).astype(jnp.float32)
    return w1_p, b1_p, w2_p, b2_p


@functools.partial(jax.jit, static_argnames=("block_rows",))
def autoencoder_forward(clean_context, w1_p, b1_p, w2_p, b2_p, *,
                        block_rows=256):
    """Baseline autoencoder forward.

    clean_context: [N, D] — flattened non-pad hidden states (streams into the
    kernel unpadded / uncopied).  (w1_p, b1_p, w2_p, b2_p) come from
    prepare_autoencoder_params().  Returns (clean_output, result) matching the
    PyTorch module: clean_output == clean_context,
    result == Linear2(sigmoid(Linear1(clean_context))).
    """
    N, D = clean_context.shape
    Hp = w1_p.shape[1]
    out_dtype = clean_context.dtype
    w_dtype = w1_p.dtype

    # Row tile.  bf16 packs 2 rows/sublane -> align to 16 rows; f32 to 8.
    row_align = 16 if jnp.dtype(w_dtype) == jnp.bfloat16 else 8
    if N <= block_rows:
        if N >= 2 * _MEGACORE_MIN_ROWS:
            # Large-but-single-tile case: split so both v7x TCs get a step.
            tm = _round_up(_cdiv(N, 2), row_align)
        else:
            # Full-dim row block: always legal, no boundary masking.
            tm = N
    else:
        tm = _round_up(block_rows, row_align)
    grid = (_cdiv(N, tm),)   # ragged tail handled by Pallas boundary masking

    x_itemsize = jnp.dtype(clean_context.dtype).itemsize
    w_itemsize = jnp.dtype(w_dtype).itemsize
    out_itemsize = jnp.dtype(out_dtype).itemsize

    # VMEM budget: weights single-buffered, x/out double-buffered.
    w_bytes = 2 * D * Hp * w_itemsize
    b_bytes = (Hp + D) * 4
    io_bytes = 2 * tm * D * (x_itemsize + out_itemsize)
    footprint = w_bytes + b_bytes + io_bytes
    vmem_limit = int(min(max(2 * footprint + (1 << 20), 32 << 20), 64 << 20))

    cost = pl.CostEstimate(
        flops=4 * N * D * Hp,                          # two matmuls
        transcendentals=N * Hp,                        # sigmoid -> exp
        bytes_accessed=(N * D * (x_itemsize + out_itemsize)
                        + 2 * D * Hp * w_itemsize
                        + (Hp + D) * 4),
    )

    # Grid-invariant operands: single-buffer (constant index_map, nothing to
    # double-buffer for).
    w_mode = pl.Buffered(buffer_count=1)

    result = pl.pallas_call(
        _ae_mlp_kernel,
        out_shape=jax.ShapeDtypeStruct((N, D), out_dtype),
        grid_spec=pl.GridSpec(
            grid=grid,
            in_specs=[
                # x: row-tiled, feature dim kept as the full array dim.
                pl.BlockSpec((tm, D), lambda i: (i, 0)),
                # weights / biases: full arrays, resident across grid steps.
                pl.BlockSpec((D, Hp), lambda i: (0, 0), pipeline_mode=w_mode),
                pl.BlockSpec((1, Hp), lambda i: (0, 0), pipeline_mode=w_mode),
                pl.BlockSpec((Hp, D), lambda i: (0, 0), pipeline_mode=w_mode),
                pl.BlockSpec((1, D), lambda i: (0, 0), pipeline_mode=w_mode),
            ],
            out_specs=pl.BlockSpec((tm, D), lambda i: (i, 0)),
        ),
        compiler_params=pltpu.CompilerParams(
            dimension_semantics=("parallel",),
            vmem_limit_bytes=vmem_limit,
        ),
        cost_estimate=cost,
    )(clean_context, w1_p, b1_p, w2_p, b2_p)

    clean_output = clean_context
    return clean_output, result


def init_autoencoder_params(key, input_size, hidden_size, param_init=0.1):
    """Mimics Autoencoder.init_model_parameters(): uniform(-param_init, param_init)."""
    k1, k2, k3, k4 = jax.random.split(key, 4)
    # Stored pre-transposed relative to torch.nn.Linear (see layout comment).
    w1 = jax.random.uniform(k1, (input_size, hidden_size), jnp.float32,
                            -param_init, param_init)
    b1 = jax.random.uniform(k2, (1, hidden_size), jnp.float32,
                            -param_init, param_init)
    w2 = jax.random.uniform(k3, (hidden_size, input_size), jnp.float32,
                            -param_init, param_init)
    b2 = jax.random.uniform(k4, (1, input_size), jnp.float32,
                            -param_init, param_init)
    return w1, b1, w2, b2


if __name__ == "__main__":
    key = jax.random.PRNGKey(0)
    k_x, k_p = jax.random.split(key)

    # Small shapes implied by the forward:
    #   batch=2, seq=8 -> 16 positions, of which 13 are non-pad tokens;
    #   encoder.model_size = 32; opt.auto_encoder_hidden_size = 16.
    input_size = 32      # nmt.encoder.model_size
    hidden_size = 16     # opt.auto_encoder_hidden_size
    n_tokens = 13        # ragged non-pad token count (tests tail handling)

    clean_context = jax.random.normal(k_x, (n_tokens, input_size), jnp.float32)
    w1, b1, w2, b2 = init_autoencoder_params(k_p, input_size, hidden_size,
                                             param_init=0.1)

    # Reference in plain JAX (torch semantics: x @ W.T + b, W pre-transposed here).
    ref_h = jax.nn.sigmoid(clean_context @ w1 + b1)
    ref = ref_h @ w2 + b2

    # Default path: bf16 weights (v6e/v7x MXU peak), f32 accumulation,
    # activations cast to bf16 in-kernel -> looser tolerance.
    p_bf16 = prepare_autoencoder_params(w1, b1, w2, b2,
                                        compute_dtype=jnp.bfloat16)
    clean_output, result_bf16 = autoencoder_forward(clean_context, *p_bf16)
    jax.block_until_ready((clean_output, result_bf16))
    assert clean_output.shape == (n_tokens, input_size)
    assert result_bf16.shape == (n_tokens, input_size)
    assert jnp.allclose(result_bf16, ref, atol=3e-2, rtol=3e-2)

    # f32 path: exact within tight tolerance.
    p_f32 = prepare_autoencoder_params(w1, b1, w2, b2,
                                       compute_dtype=jnp.float32)
    _, result_f32 = autoencoder_forward(clean_context, *p_f32)
    jax.block_until_ready(result_f32)
    assert jnp.allclose(result_f32, ref, atol=1e-5, rtol=1e-5)

    print("KERNEL_OK")
</pallas_src>

<mosaic_0001>
module attributes {stable_mosaic.version = 11 : i64} {
  func.func @_ae_mlp_kernel(%arg0: i32, %arg1: memref<13x32xf32, #tpu.memory_space<vmem>>, %arg2: memref<32x16xbf16, #tpu.memory_space<vmem>>, %arg3: memref<1x16xf32, #tpu.memory_space<vmem>>, %arg4: memref<16x32xbf16, #tpu.memory_space<vmem>>, %arg5: memref<1x32xf32, #tpu.memory_space<vmem>>, %arg6: memref<13x32xf32, #tpu.memory_space<vmem>>) attributes {dimension_semantics = [#tpu.dimension_semantics<parallel>], iteration_bounds = array<i64: 1>, scalar_prefetch = 0 : i64, scratch_operands = 0 : i64, tpu.core_type = #tpu.core_type<tc>, window_params = [{transform_indices = @transform_0, window_bounds = array<i64: 13, 32>}, {pipeline_mode = #tpu.pipeline_mode<synchronous>, transform_indices = @transform_1, window_bounds = array<i64: 32, 16>}, {pipeline_mode = #tpu.pipeline_mode<synchronous>, transform_indices = @transform_2, window_bounds = array<i64: 1, 16>}, {pipeline_mode = #tpu.pipeline_mode<synchronous>, transform_indices = @transform_3, window_bounds = array<i64: 16, 32>}, {pipeline_mode = #tpu.pipeline_mode<synchronous>, transform_indices = @transform_4, window_bounds = array<i64: 1, 32>}, {transform_indices = @transform_5, window_bounds = array<i64: 13, 32>}]} {
    %c0 = arith.constant 0 : index
    %c0_0 = arith.constant 0 : index
    %0 = vector.load %arg1[%c0, %c0_0] : memref<13x32xf32, #tpu.memory_space<vmem>>, vector<13x32xf32>
    %1 = arith.truncf %0 : vector<13x32xf32> to vector<13x32xbf16>
    %c0_1 = arith.constant 0 : index
    %c0_2 = arith.constant 0 : index
    %2 = vector.load %arg2[%c0_1, %c0_2] : memref<32x16xbf16, #tpu.memory_space<vmem>>, vector<32x16xbf16>
    %cst = arith.constant dense<0.000000e+00> : vector<13x16xf32>
    %3 = tpu.matmul %1, %2, %cst {dimension_numbers = #tpu.dot_dimension_numbers<[1], [0], [0], [1], [0, 0, 1, 1], [], []>} : vector<13x32xbf16>, vector<32x16xbf16>, vector<13x16xf32> -> vector<13x16xf32>
    %c0_3 = arith.constant 0 : index
    %c0_4 = arith.constant 0 : index
    %4 = vector.load %arg3[%c0_3, %c0_4] : memref<1x16xf32, #tpu.memory_space<vmem>>, vector<1x16xf32>
    %5 = vector.broadcast %4 : vector<1x16xf32> to vector<13x16xf32>
    %6 = arith.addf %3, %5 : vector<13x16xf32>
    %7 = arith.negf %6 : vector<13x16xf32>
    %8 = math.exp %7 : vector<13x16xf32>
    %cst_5 = arith.constant 1.000000e+00 : f32
    %9 = vector.broadcast %cst_5 : f32 to vector<13x16xf32>
    %10 = arith.addf %9, %8 : vector<13x16xf32>
    %11 = arith.divf %9, %10 : vector<13x16xf32>
    %12 = arith.truncf %11 : vector<13x16xf32> to vector<13x16xbf16>
    %c0_6 = arith.constant 0 : index
    %c0_7 = arith.constant 0 : index
    %13 = vector.load %arg4[%c0_6, %c0_7] : memref<16x32xbf16, #tpu.memory_space<vmem>>, vector<16x32xbf16>
    %cst_8 = arith.constant dense<0.000000e+00> : vector<13x32xf32>
    %14 = tpu.matmul %12, %13, %cst_8 {dimension_numbers = #tpu.dot_dimension_numbers<[1], [0], [0], [1], [0, 0, 1, 1], [], []>} : vector<13x16xbf16>, vector<16x32xbf16>, vector<13x32xf32> -> vector<13x32xf32>
    %c0_9 = arith.constant 0 : index
    %c0_10 = arith.constant 0 : index
    %15 = vector.load %arg5[%c0_9, %c0_10] : memref<1x32xf32, #tpu.memory_space<vmem>>, vector<1x32xf32>
    %16 = vector.broadcast %15 : vector<1x32xf32> to vector<13x32xf32>
    %17 = arith.addf %14, %16 : vector<13x32xf32>
    %c0_11 = arith.constant 0 : index
    %c0_12 = arith.constant 0 : index
    %18 = vector.load %arg6[%c0_11, %c0_12] : memref<13x32xf32, #tpu.memory_space<vmem>>, vector<13x32xf32>
    tpu.vector_store %arg6[%c0_11, %c0_12], %17 {strides = array<i32>} : memref<13x32xf32, #tpu.memory_space<vmem>>, vector<13x32xf32>,
    return
  }
  func.func @transform_0(%arg0: i32) -> (i32, i32) {
    %c0_i32 = arith.constant 0 : i32
    %c0_i32_0 = arith.constant 0 : i32
    return %arg0, %c0_i32 : i32, i32
  }
  func.func @transform_1(%arg0: i32) -> (i32, i32) {
    %c0_i32 = arith.constant 0 : i32
    %c0_i32_0 = arith.constant 0 : i32
    %c0_i32_1 = arith.constant 0 : i32
    return %c0_i32, %c0_i32_0 : i32, i32
  }
  func.func @transform_2(%arg0: i32) -> (i32, i32) {
    %c0_i32 = arith.constant 0 : i32
    %c0_i32_0 = arith.constant 0 : i32
    %c0_i32_1 = arith.constant 0 : i32
    return %c0_i32, %c0_i32_0 : i32, i32
  }
  func.func @transform_3(%arg0: i32) -> (i32, i32) {
    %c0_i32 = arith.constant 0 : i32
    %c0_i32_0 = arith.constant 0 : i32
    %c0_i32_1 = arith.constant 0 : i32
    return %c0_i32, %c0_i32_0 : i32, i32
  }
  func.func @transform_4(%arg0: i32) -> (i32, i32) {
    %c0_i32 = arith.constant 0 : i32
    %c0_i32_0 = arith.constant 0 : i32
    %c0_i32_1 = arith.constant 0 : i32
    return %c0_i32, %c0_i32_0 : i32, i32
  }
  func.func @transform_5(%arg0: i32) -> (i32, i32) {
    %c0_i32 = arith.constant 0 : i32
    %c0_i32_0 = arith.constant 0 : i32
    return %arg0, %c0_i32 : i32, i32
  }
}

</mosaic_0001>

<llo_original>
// kernel: autoencoder_forward.1
$region0: #{autoencoder_forward.1}
  #allocation0 [shape = 'u32[]', space=smem, size = 0x4, offset = 0x4, fixed_abs, tag = 'smem constant byte address 0x4 - core index']
  #allocation1 [shape = 'u32[144,128]{1,0:T(1,128)}', space=vmem, size = 0x12000, scoped, tag = 'internal scratch']
  %s0 = inlined_call_operand.vmem [shape: f32[13,32], index: 0, kind: input, shape index: {}]
  %s1 = inlined_call_operand.vmem [shape: bf16[32,16], index: 1, kind: input, shape index: {}]
  %s2 = inlined_call_operand.vmem [shape: f32[1,16], index: 2, kind: input, shape index: {}]
  %s3 = inlined_call_operand.vmem [shape: bf16[16,32], index: 3, kind: input, shape index: {}]
  %s4 = inlined_call_operand.vmem [shape: f32[1,32], index: 4, kind: input, shape index: {}]
  %s5 = inlined_call_operand.hbm [shape: f32[13,32], index: 5, kind: output, shape index: {}]
  %s6 = sld [smem:[#allocation0]]
  $region30: #{autoencoder_forward.1} parent=0
    _
  %s8 = ssub.s32 1, %s6
  %s9 = scalar_select 0, %s8, %s6
  $region1: #{autoencoder_forward.1} parent=0
    #allocation2 [shape = 'u8[8192]{0}', space=vmem, size = 0x2000, scoped, tag = 'output window, operand 0, single buffered']
    #allocation3 [shape = 's32[1]{0}', space=sflag, size = 0x4, scoped, tag = 'scoped memory for autoencoder_forward.1']
    %10 = vsyncpa [#allocation3], 0
    // Predicated region
    $region2: #{autoencoder_forward.1} parent=1 // pred_check
      _
    $region3: #{autoencoder_forward.1} parent=1 // pred_check_branch
      %12 = sbr.rel (0) target = $region5
    $region4: #{autoencoder_forward.1} parent=1 // pred_region
      _
    $region5: #{autoencoder_forward.1} parent=1 // pred_fallthru
      _
    // Predicated region
    $region6: #{autoencoder_forward.1} parent=1 // pred_check
      _
    $region7: #{autoencoder_forward.1} parent=1 // pred_check_branch
      %14 = sbr.rel (0) target = $region9
    $region8: #{autoencoder_forward.1} parent=1 // pred_region
      _
    $region9: #{autoencoder_forward.1} parent=1 // pred_fallthru
      _
    // Predicated region
    $region10: #{autoencoder_forward.1} parent=1 // pred_check
      _
    $region11: #{autoencoder_forward.1} parent=1 // pred_check_branch
      %16 = sbr.rel (0) target = $region13
    $region12: #{autoencoder_forward.1} parent=1 // pred_region
      _
    $region13: #{autoencoder_forward.1} parent=1 // pred_fallthru
      _
    // Predicated region
    $region14: #{autoencoder_forward.1} parent=1 // pred_check
      _
    $region15: #{autoencoder_forward.1} parent=1 // pred_check_branch
      %18 = sbr.rel (0) target = $region17
    $region16: #{autoencoder_forward.1} parent=1 // pred_region
      _
    $region17: #{autoencoder_forward.1} parent=1 // pred_fallthru
      _
    // Predicated region
    $region18: #{autoencoder_forward.1} parent=1 // pred_check
      _
    $region19: #{autoencoder_forward.1} parent=1 // pred_check_branch
      %20 = sbr.rel (0) target = $region21
    $region20: #{autoencoder_forward.1} parent=1 // pred_region
      _
    $region21: #{autoencoder_forward.1} parent=1 // pred_fallthru
      _
    %v22 = vld [vmem:[%s0] sm:$0xff]
    %v23 = vld [vmem:[%s0 + $0x8] sm:$0x1f]
    %v24 = vpack.c.bf16 %v23, %v22
    %v25 = vld [vmem:[%s1] sm:$0xf]
    %v26 = vld [vmem:[%s1 + $0x4] sm:$0xf]
    %v27 = vld [vmem:[%s1 + $0x8] sm:$0xf]
    %v28 = vld [vmem:[%s1 + $0xc] sm:$0xf]
    %v29 = vld [vmem:[%s2] sm:$0x1]
    %v31 = vlaneseq
    %v32 = vshrl.u32 %v31, 7
    %v33 = vsub.s32 0, %v32
    %v34 = vrot.slane %v29, %v33
    %v40 = vunpack.c.l.b16 %v25
    %v41 = vunpack.c.l.b16 %v26
    %v42 = vunpack.c.l.b16 %v27
    %v43 = vunpack.c.l.b16 %v28
    %v44 = vpack.c.b16 %v41, %v40
    %v45 = vpack.c.b16 %v43, %v42
    %vm48 = vcmask 261120
    %v50 = vsel %vm48, %v24, 0
    %52 = vmatprep.subr.bf16.mxu0 0
    %53 = vmatpush1.bf16.msra.mxu0 0
    %54 = vmatprep.subr.bf16.mxu0 0
    %55 = vmatpush1.bf16.msra.mxu0 0
    %56 = vmatprep.subr.bf16.mxu0 0
    %57 = vmatpush1.bf16.msra.mxu0 0
    %58 = vmatprep.subr.bf16.mxu0 0
    %59 = vmatpush1.bf16.msra.mxu0 0
    %60 = vmatprep.subr.bf16.mxu0 0
    %61 = vmatpush1.bf16.msra.mxu0 0
    %62 = vmatprep.subr.bf16.mxu0 0
    %63 = vmatpush1.bf16.msra.mxu0 0
    %64 = vmatprep.subr.bf16.mxu0 0
    %65 = vmatpush1.bf16.msra.mxu0 %v45
    %66 = vmatprep.subr.bf16.mxu0 0
    %67 = vmatpush1.bf16.msra.mxu0 %v44
    %68 = vmatprep.subr.bf16.mxu0 0
    %69 = vmatpush2.bf16.msra.mxu0 0
    %70 = vmatprep.subr.bf16.mxu0 0
    %71 = vmatpush2.bf16.msra.mxu0 0
    %72 = vmatprep.subr.bf16.mxu0 0
    %73 = vmatpush2.bf16.msra.mxu0 0
    %74 = vmatprep.subr.bf16.mxu0 0
    %75 = vmatpush2.bf16.msra.mxu0 0
    %76 = vmatprep.subr.bf16.mxu0 0
    %77 = vmatpush2.bf16.msra.mxu0 0
    %78 = vmatprep.subr.bf16.mxu0 0
    %79 = vmatpush2.bf16.msra.mxu0 0
    %80 = vmatprep.subr.bf16.mxu0 0
    %81 = vmatpush2.bf16.msra.mxu0 0
    %82 = vmatprep.subr.bf16.mxu0 0
    %83 = vmatpush2.bf16.msra.mxu0 0
    %84 = vmatprep.mubr.bf16.mxu0 0
    %85 = vmatmul.mubr.bf16.gmra.mxu0 %v50
    %v86 = vpop.f32.mrf.mxu0
    %v87 = vadd.f32 %v34, %v86
    %v88 = vpop.f32.mrf.mxu0
    %v89 = vpop.f32.mrf.mxu0
    %v90 = vadd.f32 %v34, %v89
    %v91 = vpop.f32.mrf.mxu0
    %92 = vdwg.mxu0
    %v93 = vxor.u32 %v87, 2147483648
    %v94 = vxor.u32 %v90, 2147483648
    %v95 = vmul.f32 %v93, 1.442695
    %v96 = vpow.pop %v95
    %v97 = vmul.f32 %v94, 1.442695
    %v98 = vpow.pop %v97
    %v99 = vadd.f32 %v96, 1.0
    %v100 = vadd.f32 %v98, 1.0
    %v101 = vrcp.pop %v99
    %v102 = vmul.f32 1.0, %v101
    %v103 = vrcp.pop %v100
    %v104 = vmul.f32 1.0, %v103
    %v105 = vpack.c.bf16 %v104, %v102
    %v106 = vld [vmem:[%s3] sm:$0xf]
    %v107 = vld [vmem:[%s3 + $0x4] sm:$0xf]
    %v108 = vld [vmem:[%s4] sm:$0x1]
    %v110 = vlaneseq
    %v111 = vshrl.u32 %v110, 7
    %v112 = vsub.s32 0, %v111
    %v113 = vrot.slane %v108, %v112
    %v117 = vunpack.c.l.b16 %v106
    %v118 = vunpack.c.l.b16 %v107
    %v119 = vpack.c.b16 %v118, %v117
    %vm121 = vcmask 130048
    %v123 = vsel %vm121, %v105, 0
    %125 = vmatprep.subr.bf16.mxu0 0
    %126 = vmatpush1.bf16.msra.mxu0 0
    %127 = vmatprep.subr.bf16.mxu0 0
    %128 = vmatpush1.bf16.msra.mxu0 0
    %129 = vmatprep.subr.bf16.mxu0 0
    %130 = vmatpush1.bf16.msra.mxu0 0
    %131 = vmatprep.subr.bf16.mxu0 0
    %132 = vmatpush1.bf16.msra.mxu0 0
    %133 = vmatprep.subr.bf16.mxu0 0
    %134 = vmatpush1.bf16.msra.mxu0 0
    %135 = vmatprep.subr.bf16.mxu0 0
    %136 = vmatpush1.bf16.msra.mxu0 0
    %137 = vmatprep.subr.bf16.mxu0 0
    %138 = vmatpush1.bf16.msra.mxu0 0
    %139 = vmatprep.subr.bf16.mxu0 0
    %140 = vmatpush1.bf16.msra.mxu0 %v119
    %141 = vmatprep.subr.bf16.mxu0 0
    %142 = vmatpush2.bf16.msra.mxu0 0
    %143 = vmatprep.subr.bf16.mxu0 0
    %144 = vmatpush2.bf16.msra.mxu0 0
    %145 = vmatprep.subr.bf16.mxu0 0
    %146 = vmatpush2.bf16.msra.mxu0 0
    %147 = vmatprep.subr.bf16.mxu0 0
    %148 = vmatpush2.bf16.msra.mxu0 0
    %149 = vmatprep.subr.bf16.mxu0 0
    %150 = vmatpush2.bf16.msra.mxu0 0
    %151 = vmatprep.subr.bf16.mxu0 0
    %152 = vmatpush2.bf16.msra.mxu0 0
    %153 = vmatprep.subr.bf16.mxu0 0
    %154 = vmatpush2.bf16.msra.mxu0 0
    %155 = vmatprep.subr.bf16.mxu0 0
    %156 = vmatpush2.bf16.msra.mxu0 0
    %157 = vmatprep.mubr.bf16.mxu0 0
    %158 = vmatmul.mubr.bf16.gmra.mxu0 %v123
    %v159 = vpop.f32.mrf.mxu0
    %v160 = vadd.f32 %v113, %v159
    %v161 = vpop.f32.mrf.mxu0
    %v162 = vpop.f32.mrf.mxu0
    %v163 = vadd.f32 %v113, %v162
    %v164 = vpop.f32.mrf.mxu0
    %165 = vdwg.mxu0
    %166 = vst.msk [vmem:[#allocation2] sm:$0xff] %vm48, %v160
    %vm167 = vcmask 258048
    %168 = vst.msk [vmem:[#allocation2 + $0x8] sm:$0x1f] %vm167, %v163
    // Predicated region
    $region22: #{autoencoder_forward.1} parent=1 // pred_check
      _
    $region23: #{autoencoder_forward.1} parent=1 // pred_check_branch
      %170 = sbr.rel (0) target = $region25
    $region24: #{autoencoder_forward.1} parent=1 // pred_region
      %s172 = ssub.s32 256, 256
      %173 = vsyncadd [#allocation3], %s172
      %s174 = sshll.u32 [#allocation2], 4
      %s175 = int_to_ptr.vmem [resolvable:$true] %s174
      %180 = dma.vmem_to_hbm [thread:$0]  %s175, 256, %s5, [#allocation3], 128, 128, 8
    $region25: #{autoencoder_forward.1} parent=1 // pred_fallthru
      _
    // Predicated region
    $region26: #{autoencoder_forward.1} parent=1 // pred_check
      _
    $region27: #{autoencoder_forward.1} parent=1 // pred_check_branch
      %182 = sbr.rel (0) target = $region29
    $region28: #{autoencoder_forward.1} parent=1 // pred_region
      %183 = dma.done [#allocation3], 256
    $region29: #{autoencoder_forward.1} parent=1 // pred_fallthru
      _
    %184 = vsyncpa [#allocation3], 1

</llo_original>
